<compile_context>
chip_gen: v7x
topology: tpu7x:2x2x1
jax: 0.10.0
libtpu: 0.0.40
codegen_flags: <defaults>
</compile_context>

<pallas_src>
import functools

import numpy as np
import jax
import jax.numpy as jnp
from jax.experimental import pallas as pl
from jax.experimental.pallas import tpu as pltpu

LANE = 128  # TPU lane width: hidden / class dims are padded up to this


def _round_up(v, m):
    return ((v + m - 1) // m) * m


# ------------------------------ fused Pallas kernel ------------------------------ #

def _gcn_layer(a, x, w, b):
    """relu(A @ X @ W + b), reassociated (static choice) to minimize FLOPs."""
    f32 = jnp.float32
    if x.shape[1] <= w.shape[1]:
        # (A @ X) @ W is cheaper when in_features <= out_features
        agg = jnp.dot(jnp.dot(a, x, preferred_element_type=f32), w,
                      preferred_element_type=f32)
    else:
        agg = jnp.dot(a, jnp.dot(x, w, preferred_element_type=f32),
                      preferred_element_type=f32)
    return jnp.maximum(agg + b, 0.0)


def fused_gcn_kernel(a_ref, x_ref, w1_ref, b1_ref, w2_ref, b2_ref,
                     wl_ref, bl_ref, sel_ref,
                     logp_ref, out_ref, feat_ref, *, num_classes):
    """Whole GCN forward in one kernel.

    Inputs (all f32, whole-array VMEM blocks, lane-padded where noted):
      a_ref   : [n, n]        normalized dense adjacency
      x_ref   : [n, f]        node features
      w1_ref  : [f, Hp]       conv1 weight (Hp = hidden padded to 128)
      b1_ref  : [1, Hp]
      w2_ref  : [Hp, Hp]      conv2 weight (zero-padded rows/cols)
      b2_ref  : [1, Hp]
      wl_ref  : [Hp, Cp]      lin weight  (Cp = classes padded to 128)
      bl_ref  : [1, Cp]
      sel_ref : [B, n]        one-hot batch_index selection matrix
    Outputs:
      logp_ref: [B, Cp]  masked log_softmax (padding columns are garbage, sliced off)
      out_ref : [B, Cp]  relu(lin(features))[batch]
      feat_ref: [B, Hp]  features[batch]
    """
    a = a_ref[...]

    # conv1 + relu, conv2 + relu -- intermediates never leave VMEM
    h = _gcn_layer(a, x_ref[...], w1_ref[...], b1_ref[...])
    h = _gcn_layer(a, h, w2_ref[...], b2_ref[...])

    # in-kernel row gather: features[batch_index] via one-hot selection matmul (MXU)
    feat = jnp.dot(sel_ref[...], h, preferred_element_type=jnp.float32)
    feat_ref[...] = feat

    # lin + relu applied only to the selected batch rows (row-wise op commutes
    # with the gather, so this matches relu(lin(h))[batch_index])
    z = jnp.maximum(
        jnp.dot(feat, wl_ref[...], preferred_element_type=jnp.float32) + bl_ref[...],
        0.0)
    out_ref[...] = z

    # log_softmax over the real class columns only (mask out lane padding)
    col = jax.lax.broadcasted_iota(jnp.int32, z.shape, 1)
    zm = jnp.where(col < num_classes, z, jnp.float32(-1e30))
    m = jnp.max(zm, axis=-1, keepdims=True)
    s = zm - m
    lse = jnp.log(jnp.sum(jnp.exp(s), axis=-1, keepdims=True))
    logp_ref[...] = s - lse


# ------------------------------ pallas_call wrapper ------------------------------ #

def _full_spec(shape):
    # whole-array block (everything here fits trivially in VMEM)
    return pl.BlockSpec(shape, lambda i: (0,) * len(shape))


def fused_gcn_forward(a_norm, x, sel, params, *, num_classes):
    n, f = x.shape
    b = sel.shape[0]
    h_pad = params["conv1_w"].shape[1]
    c_pad = params["lin_w"].shape[1]

    kernel = functools.partial(fused_gcn_kernel, num_classes=num_classes)
    return pl.pallas_call(
        kernel,
        out_shape=(
            jax.ShapeDtypeStruct((b, c_pad), jnp.float32),   # log_softmax(out)
            jax.ShapeDtypeStruct((b, c_pad), jnp.float32),   # out
            jax.ShapeDtypeStruct((b, h_pad), jnp.float32),   # features[batch]
        ),
        grid=(1,),
        in_specs=[
            _full_spec((n, n)),          # a_norm
            _full_spec((n, f)),          # x
            _full_spec((f, h_pad)),      # conv1_w
            _full_spec((1, h_pad)),      # conv1_b
            _full_spec((h_pad, h_pad)),  # conv2_w
            _full_spec((1, h_pad)),      # conv2_b
            _full_spec((h_pad, c_pad)),  # lin_w
            _full_spec((1, c_pad)),      # lin_b
            _full_spec((b, n)),          # one-hot batch selection
        ],
        out_specs=(
            _full_spec((b, c_pad)),
            _full_spec((b, c_pad)),
            _full_spec((b, h_pad)),
        ),
        compiler_params=pltpu.CompilerParams(dimension_semantics=("arbitrary",)),
    )(a_norm, x,
      params["conv1_w"], params["conv1_b"],
      params["conv2_w"], params["conv2_b"],
      params["lin_w"], params["lin_b"],
      sel)


# ------------------------------ glue (plain JAX, jitted) ------------------------------ #

def build_norm_adj(edge_index, num_nodes):
    """Dense D^{-1/2} (A + I) D^{-1/2}, scatter-free (one-hot matmuls, MXU-friendly).

    edge_index[0] = source nodes, edge_index[1] = target nodes; messages flow
    source -> target, degree is counted on the target index (with self loops)."""
    src = edge_index[0]
    dst = edge_index[1]
    d_oh = jax.nn.one_hot(dst, num_nodes, dtype=jnp.float32)   # [E, n]
    s_oh = jax.nn.one_hot(src, num_nodes, dtype=jnp.float32)   # [E, n]
    a = jnp.dot(d_oh.T, s_oh) + jnp.eye(num_nodes, dtype=jnp.float32)
    deg = jnp.sum(a, axis=1)                                   # in-degree incl. self loop
    dinv = jnp.where(deg > 0, jax.lax.rsqrt(deg), 0.0)
    return a * dinv[:, None] * dinv[None, :]


def init_params(num_features, hidden_channels, num_classes, seed=12345):
    """Deterministic synthetic parameters, lane-padded (zeros) to 128-wide slabs.

    Zero padding is exact: padded hidden/class columns stay identically zero
    through matmul + bias + relu, and are sliced off after the kernel."""
    h_pad = _round_up(hidden_channels, LANE)
    c_pad = _round_up(num_classes, LANE)
    key = jax.random.PRNGKey(seed)
    k = jax.random.split(key, 6)
    scale = 0.1

    def pad(arr, shape):
        return jnp.pad(arr, [(0, t - s) for s, t in zip(arr.shape, shape)])

    w1 = scale * jax.random.normal(k[0], (num_features, hidden_channels), jnp.float32)
    b1 = scale * jax.random.normal(k[1], (1, hidden_channels), jnp.float32)
    w2 = scale * jax.random.normal(k[2], (hidden_channels, hidden_channels), jnp.float32)
    b2 = scale * jax.random.normal(k[3], (1, hidden_channels), jnp.float32)
    wl = scale * jax.random.normal(k[4], (hidden_channels, num_classes), jnp.float32)
    bl = scale * jax.random.normal(k[5], (1, num_classes), jnp.float32)

    return {
        "conv1_w": pad(w1, (num_features, h_pad)),
        "conv1_b": pad(b1, (1, h_pad)),
        "conv2_w": pad(w2, (h_pad, h_pad)),
        "conv2_b": pad(b2, (1, h_pad)),
        "lin_w": pad(wl, (h_pad, c_pad)),
        "lin_b": pad(bl, (1, c_pad)),
    }


@functools.partial(jax.jit, static_argnames=("hidden_channels", "num_classes"))
def _gcn_forward_jit(x, edge_index, batch_index, params, hidden_channels, num_classes):
    num_nodes = x.shape[0]
    # If edge_index is static across calls, a_norm could be hoisted out and reused.
    a_norm = build_norm_adj(edge_index, num_nodes)
    sel = jax.nn.one_hot(batch_index, num_nodes, dtype=jnp.float32)
    logp_p, out_p, feat_p = fused_gcn_forward(a_norm, x, sel, params,
                                              num_classes=num_classes)
    # strip lane padding
    return (logp_p[:, :num_classes],
            out_p[:, :num_classes],
            feat_p[:, :hidden_channels])


def gcn_forward(x, edge_index, batch_index, params, hidden_channels, num_classes):
    logp, out, feat = _gcn_forward_jit(x, edge_index, batch_index, params,
                                       hidden_channels, num_classes)
    # third return mirrors `features[batch_index].detach().cpu().numpy()`
    return logp, out, np.asarray(feat)


# ----------------------------------- main ----------------------------------- #

if __name__ == "__main__":
    num_nodes = 16
    num_features = 8
    hidden_channels = 32
    num_classes = 4
    num_edges = 24
    batch_size = 8

    key = jax.random.PRNGKey(0)
    kx, ks, kd, kb = jax.random.split(key, 4)

    x = jax.random.normal(kx, (num_nodes, num_features), dtype=jnp.float32)

    # random undirected edge set (each edge added in both directions)
    src = jax.random.randint(ks, (num_edges,), 0, num_nodes)
    dst = jax.random.randint(kd, (num_edges,), 0, num_nodes)
    edge_index = jnp.stack(
        [jnp.concatenate([src, dst]), jnp.concatenate([dst, src])], axis=0
    ).astype(jnp.int32)

    batch_index = jax.random.randint(kb, (batch_size,), 0, num_nodes).astype(jnp.int32)

    params = init_params(num_features, hidden_channels, num_classes)

    logp, out, feats_np = gcn_forward(x, edge_index, batch_index, params,
                                      hidden_channels, num_classes)
    jax.block_until_ready((logp, out))

    assert logp.shape == (batch_size, num_classes)
    assert out.shape == (batch_size, num_classes)
    assert feats_np.shape == (batch_size, hidden_channels)
    # log_softmax rows must sum (in prob space) to 1
    assert np.allclose(np.exp(np.asarray(logp)).sum(axis=1), 1.0, atol=1e-5)
    # out must be non-negative (post-ReLU)
    assert np.all(np.asarray(out) >= 0.0)

    print("KERNEL_OK")
</pallas_src>

<mosaic_0001>
module attributes {stable_mosaic.version = 11 : i64} {
  func.func @fused_gcn_kernel(%arg0: i32, %arg1: memref<16x16xf32, #tpu.memory_space<vmem>>, %arg2: memref<16x8xf32, #tpu.memory_space<vmem>>, %arg3: memref<8x128xf32, #tpu.memory_space<vmem>>, %arg4: memref<1x128xf32, #tpu.memory_space<vmem>>, %arg5: memref<128x128xf32, #tpu.memory_space<vmem>>, %arg6: memref<1x128xf32, #tpu.memory_space<vmem>>, %arg7: memref<128x128xf32, #tpu.memory_space<vmem>>, %arg8: memref<1x128xf32, #tpu.memory_space<vmem>>, %arg9: memref<8x16xf32, #tpu.memory_space<vmem>>, %arg10: memref<8x128xf32, #tpu.memory_space<vmem>>, %arg11: memref<8x128xf32, #tpu.memory_space<vmem>>, %arg12: memref<8x128xf32, #tpu.memory_space<vmem>>) attributes {dimension_semantics = [#tpu.dimension_semantics<arbitrary>], iteration_bounds = array<i64: 1>, scalar_prefetch = 0 : i64, scratch_operands = 0 : i64, tpu.core_type = #tpu.core_type<tc>, window_params = [{pipeline_mode = #tpu.pipeline_mode<synchronous>, transform_indices = @transform_0, window_bounds = array<i64: 16, 16>}, {pipeline_mode = #tpu.pipeline_mode<synchronous>, transform_indices = @transform_1, window_bounds = array<i64: 16, 8>}, {pipeline_mode = #tpu.pipeline_mode<synchronous>, transform_indices = @transform_2, window_bounds = array<i64: 8, 128>}, {pipeline_mode = #tpu.pipeline_mode<synchronous>, transform_indices = @transform_3, window_bounds = array<i64: 1, 128>}, {pipeline_mode = #tpu.pipeline_mode<synchronous>, transform_indices = @transform_4, window_bounds = array<i64: 128, 128>}, {pipeline_mode = #tpu.pipeline_mode<synchronous>, transform_indices = @transform_5, window_bounds = array<i64: 1, 128>}, {pipeline_mode = #tpu.pipeline_mode<synchronous>, transform_indices = @transform_6, window_bounds = array<i64: 128, 128>}, {pipeline_mode = #tpu.pipeline_mode<synchronous>, transform_indices = @transform_7, window_bounds = array<i64: 1, 128>}, {pipeline_mode = #tpu.pipeline_mode<synchronous>, transform_indices = @transform_8, window_bounds = array<i64: 8, 16>}, {pipeline_mode = #tpu.pipeline_mode<synchronous>, transform_indices = @transform_9, window_bounds = array<i64: 8, 128>}, {pipeline_mode = #tpu.pipeline_mode<synchronous>, transform_indices = @transform_10, window_bounds = array<i64: 8, 128>}, {pipeline_mode = #tpu.pipeline_mode<synchronous>, transform_indices = @transform_11, window_bounds = array<i64: 8, 128>}]} {
    %c0 = arith.constant 0 : index
    %c0_0 = arith.constant 0 : index
    %0 = vector.load %arg1[%c0, %c0_0] : memref<16x16xf32, #tpu.memory_space<vmem>>, vector<16x16xf32>
    %c0_1 = arith.constant 0 : index
    %c0_2 = arith.constant 0 : index
    %1 = vector.load %arg2[%c0_1, %c0_2] : memref<16x8xf32, #tpu.memory_space<vmem>>, vector<16x8xf32>
    %c0_3 = arith.constant 0 : index
    %c0_4 = arith.constant 0 : index
    %2 = vector.load %arg3[%c0_3, %c0_4] : memref<8x128xf32, #tpu.memory_space<vmem>>, vector<8x128xf32>
    %c0_5 = arith.constant 0 : index
    %c0_6 = arith.constant 0 : index
    %3 = vector.load %arg4[%c0_5, %c0_6] : memref<1x128xf32, #tpu.memory_space<vmem>>, vector<1x128xf32>
    %cst = arith.constant dense<0.000000e+00> : vector<16x8xf32>
    %4 = tpu.matmul %0, %1, %cst {dimension_numbers = #tpu.dot_dimension_numbers<[1], [0], [0], [1], [0, 0, 1, 1], [], []>} : vector<16x16xf32>, vector<16x8xf32>, vector<16x8xf32> -> vector<16x8xf32>
    %cst_7 = arith.constant dense<0.000000e+00> : vector<16x128xf32>
    %5 = tpu.matmul %4, %2, %cst_7 {dimension_numbers = #tpu.dot_dimension_numbers<[1], [0], [0], [1], [0, 0, 1, 1], [], []>} : vector<16x8xf32>, vector<8x128xf32>, vector<16x128xf32> -> vector<16x128xf32>
    %6 = vector.broadcast %3 : vector<1x128xf32> to vector<16x128xf32>
    %7 = arith.addf %5, %6 : vector<16x128xf32>
    %cst_8 = arith.constant 0.000000e+00 : f32
    %8 = vector.broadcast %cst_8 : f32 to vector<16x128xf32>
    %9 = arith.maximumf %7, %8 : vector<16x128xf32>
    %c0_9 = arith.constant 0 : index
    %c0_10 = arith.constant 0 : index
    %10 = vector.load %arg5[%c0_9, %c0_10] : memref<128x128xf32, #tpu.memory_space<vmem>>, vector<128x128xf32>
    %c0_11 = arith.constant 0 : index
    %c0_12 = arith.constant 0 : index
    %11 = vector.load %arg6[%c0_11, %c0_12] : memref<1x128xf32, #tpu.memory_space<vmem>>, vector<1x128xf32>
    %cst_13 = arith.constant dense<0.000000e+00> : vector<16x128xf32>
    %12 = tpu.matmul %0, %9, %cst_13 {dimension_numbers = #tpu.dot_dimension_numbers<[1], [0], [0], [1], [0, 0, 1, 1], [], []>} : vector<16x16xf32>, vector<16x128xf32>, vector<16x128xf32> -> vector<16x128xf32>
    %cst_14 = arith.constant dense<0.000000e+00> : vector<16x128xf32>
    %13 = tpu.matmul %12, %10, %cst_14 {dimension_numbers = #tpu.dot_dimension_numbers<[1], [0], [0], [1], [0, 0, 1, 1], [], []>} : vector<16x128xf32>, vector<128x128xf32>, vector<16x128xf32> -> vector<16x128xf32>
    %14 = vector.broadcast %11 : vector<1x128xf32> to vector<16x128xf32>
    %15 = arith.addf %13, %14 : vector<16x128xf32>
    %cst_15 = arith.constant 0.000000e+00 : f32
    %16 = vector.broadcast %cst_15 : f32 to vector<16x128xf32>
    %17 = arith.maximumf %15, %16 : vector<16x128xf32>
    %c0_16 = arith.constant 0 : index
    %c0_17 = arith.constant 0 : index
    %18 = vector.load %arg9[%c0_16, %c0_17] : memref<8x16xf32, #tpu.memory_space<vmem>>, vector<8x16xf32>
    %cst_18 = arith.constant dense<0.000000e+00> : vector<8x128xf32>
    %19 = tpu.matmul %18, %17, %cst_18 {dimension_numbers = #tpu.dot_dimension_numbers<[1], [0], [0], [1], [0, 0, 1, 1], [], []>} : vector<8x16xf32>, vector<16x128xf32>, vector<8x128xf32> -> vector<8x128xf32>
    %c0_19 = arith.constant 0 : index
    %c0_20 = arith.constant 0 : index
    %20 = vector.load %arg12[%c0_19, %c0_20] : memref<8x128xf32, #tpu.memory_space<vmem>>, vector<8x128xf32>
    tpu.vector_store %arg12[%c0_19, %c0_20], %19 {strides = array<i32>} : memref<8x128xf32, #tpu.memory_space<vmem>>, vector<8x128xf32>,
    %c0_21 = arith.constant 0 : index
    %c0_22 = arith.constant 0 : index
    %21 = vector.load %arg7[%c0_21, %c0_22] : memref<128x128xf32, #tpu.memory_space<vmem>>, vector<128x128xf32>
    %cst_23 = arith.constant dense<0.000000e+00> : vector<8x128xf32>
    %22 = tpu.matmul %19, %21, %cst_23 {dimension_numbers = #tpu.dot_dimension_numbers<[1], [0], [0], [1], [0, 0, 1, 1], [], []>} : vector<8x128xf32>, vector<128x128xf32>, vector<8x128xf32> -> vector<8x128xf32>
    %c0_24 = arith.constant 0 : index
    %c0_25 = arith.constant 0 : index
    %23 = vector.load %arg8[%c0_24, %c0_25] : memref<1x128xf32, #tpu.memory_space<vmem>>, vector<1x128xf32>
    %24 = vector.broadcast %23 : vector<1x128xf32> to vector<8x128xf32>
    %25 = arith.addf %22, %24 : vector<8x128xf32>
    %cst_26 = arith.constant 0.000000e+00 : f32
    %26 = vector.broadcast %cst_26 : f32 to vector<8x128xf32>
    %27 = arith.maximumf %25, %26 : vector<8x128xf32>
    %c0_27 = arith.constant 0 : index
    %c0_28 = arith.constant 0 : index
    %28 = vector.load %arg11[%c0_27, %c0_28] : memref<8x128xf32, #tpu.memory_space<vmem>>, vector<8x128xf32>
    tpu.vector_store %arg11[%c0_27, %c0_28], %27 {strides = array<i32>} : memref<8x128xf32, #tpu.memory_space<vmem>>, vector<8x128xf32>,
    %29 = tpu.iota {dimensions = array<i32: 1>} : vector<8x128xi32>
    %c4_i32 = arith.constant 4 : i32
    %30 = vector.broadcast %c4_i32 : i32 to vector<8x128xi32>
    %31 = arith.cmpi slt, %29, %30 : vector<8x128xi32>
    %cst_29 = arith.constant -1.000000e+30 : f32
    %32 = vector.broadcast %cst_29 : f32 to vector<8x128xf32>
    %33 = arith.select %31, %27, %32 : vector<8x128xi1>, vector<8x128xf32>
    %cst_30 = arith.constant dense<0xFF800000> : vector<8xf32>
    %34 = vector.multi_reduction <maximumf>, %33, %cst_30 [1] : vector<8x128xf32> to vector<8xf32>
    %35 = vector.shape_cast %34 : vector<8xf32> to vector<8x1xf32>
    %36 = vector.broadcast %35 : vector<8x1xf32> to vector<8x128xf32>
    %37 = arith.subf %33, %36 : vector<8x128xf32>
    %38 = math.exp %37 : vector<8x128xf32>
    %cst_31 = arith.constant dense<0.000000e+00> : vector<8xf32>
    %39 = vector.multi_reduction <add>, %38, %cst_31 [1] : vector<8x128xf32> to vector<8xf32>
    %40 = vector.shape_cast %39 : vector<8xf32> to vector<8x1xf32>
    %41 = math.log %40 : vector<8x1xf32>
    %42 = vector.broadcast %41 : vector<8x1xf32> to vector<8x128xf32>
    %43 = arith.subf %37, %42 : vector<8x128xf32>
    %c0_32 = arith.constant 0 : index
    %c0_33 = arith.constant 0 : index
    %44 = vector.load %arg10[%c0_32, %c0_33] : memref<8x128xf32, #tpu.memory_space<vmem>>, vector<8x128xf32>
    tpu.vector_store %arg10[%c0_32, %c0_33], %43 {strides = array<i32>} : memref<8x128xf32, #tpu.memory_space<vmem>>, vector<8x128xf32>,
    return
  }
  func.func @transform_0(%arg0: i32) -> (i32, i32) {
    %c0_i32 = arith.constant 0 : i32
    %c0_i32_0 = arith.constant 0 : i32
    %c0_i32_1 = arith.constant 0 : i32
    return %c0_i32, %c0_i32_0 : i32, i32
  }
  func.func @transform_1(%arg0: i32) -> (i32, i32) {
    %c0_i32 = arith.constant 0 : i32
    %c0_i32_0 = arith.constant 0 : i32
    %c0_i32_1 = arith.constant 0 : i32
    return %c0_i32, %c0_i32_0 : i32, i32
  }
  func.func @transform_2(%arg0: i32) -> (i32, i32) {
    %c0_i32 = arith.constant 0 : i32
    %c0_i32_0 = arith.constant 0 : i32
    %c0_i32_1 = arith.constant 0 : i32
    return %c0_i32, %c0_i32_0 : i32, i32
  }
  func.func @transform_3(%arg0: i32) -> (i32, i32) {
    %c0_i32 = arith.constant 0 : i32
    %c0_i32_0 = arith.constant 0 : i32
    %c0_i32_1 = arith.constant 0 : i32
    return %c0_i32, %c0_i32_0 : i32, i32
  }
  func.func @transform_4(%arg0: i32) -> (i32, i32) {
    %c0_i32 = arith.constant 0 : i32
    %c0_i32_0 = arith.constant 0 : i32
    %c0_i32_1 = arith.constant 0 : i32
    return %c0_i32, %c0_i32_0 : i32, i32
  }
  func.func @transform_5(%arg0: i32) -> (i32, i32) {
    %c0_i32 = arith.constant 0 : i32
    %c0_i32_0 = arith.constant 0 : i32
    %c0_i32_1 = arith.constant 0 : i32
    return %c0_i32, %c0_i32_0 : i32, i32
  }
  func.func @transform_6(%arg0: i32) -> (i32, i32) {
    %c0_i32 = arith.constant 0 : i32
    %c0_i32_0 = arith.constant 0 : i32
    %c0_i32_1 = arith.constant 0 : i32
    return %c0_i32, %c0_i32_0 : i32, i32
  }
  func.func @transform_7(%arg0: i32) -> (i32, i32) {
    %c0_i32 = arith.constant 0 : i32
    %c0_i32_0 = arith.constant 0 : i32
    %c0_i32_1 = arith.constant 0 : i32
    return %c0_i32, %c0_i32_0 : i32, i32
  }
  func.func @transform_8(%arg0: i32) -> (i32, i32) {
    %c0_i32 = arith.constant 0 : i32
    %c0_i32_0 = arith.constant 0 : i32
    %c0_i32_1 = arith.constant 0 : i32
    return %c0_i32, %c0_i32_0 : i32, i32
  }
  func.func @transform_9(%arg0: i32) -> (i32, i32) {
    %c0_i32 = arith.constant 0 : i32
    %c0_i32_0 = arith.constant 0 : i32
    %c0_i32_1 = arith.constant 0 : i32
    return %c0_i32, %c0_i32_0 : i32, i32
  }
  func.func @transform_10(%arg0: i32) -> (i32, i32) {
    %c0_i32 = arith.constant 0 : i32
    %c0_i32_0 = arith.constant 0 : i32
    %c0_i32_1 = arith.constant 0 : i32
    return %c0_i32, %c0_i32_0 : i32, i32
  }
  func.func @transform_11(%arg0: i32) -> (i32, i32) {
    %c0_i32 = arith.constant 0 : i32
    %c0_i32_0 = arith.constant 0 : i32
    %c0_i32_1 = arith.constant 0 : i32
    return %c0_i32, %c0_i32_0 : i32, i32
  }
}

</mosaic_0001>

<llo_original>
// kernel: _gcn_forward_jit.1
$region0: #{_gcn_forward_jit.1}
  #allocation0 [shape = 'u32[]', space=smem, size = 0x4, offset = 0x4, fixed_abs, tag = 'smem constant byte address 0x4 - core index']
  #allocation1 [shape = 'u32[144,128]{1,0:T(1,128)}', space=vmem, size = 0x12000, scoped, tag = 'internal scratch']
  %s0 = inlined_call_operand.vmem [shape: f32[16,16], index: 0, kind: input, shape index: {}]
  %s1 = inlined_call_operand.vmem [shape: f32[16,8], index: 1, kind: input, shape index: {}]
  %s2 = inlined_call_operand.vmem [shape: f32[8,128], index: 2, kind: input, shape index: {}]
  %s3 = inlined_call_operand.vmem [shape: f32[1,128], index: 3, kind: input, shape index: {}]
  %s4 = inlined_call_operand.vmem [shape: f32[128,128], index: 4, kind: input, shape index: {}]
  %s5 = inlined_call_operand.vmem [shape: f32[1,128], index: 5, kind: input, shape index: {}]
  %s6 = inlined_call_operand.vmem [shape: f32[128,128], index: 6, kind: input, shape index: {}]
  %s7 = inlined_call_operand.vmem [shape: f32[1,128], index: 7, kind: input, shape index: {}]
  %s8 = inlined_call_operand.vmem [shape: f32[8,16], index: 8, kind: input, shape index: {}]
  %s9 = inlined_call_operand.vmem [shape: f32[8,128], index: 9, kind: output, shape index: {0}]
  %s10 = inlined_call_operand.vmem [shape: f32[8,128], index: 10, kind: output, shape index: {1}]
  %s11 = inlined_call_operand.hbm [shape: f32[8,128], index: 11, kind: output, shape index: {2}]
  %12 = xla_tuple %s9, %s10, %s11
  %s13 = sld [smem:[#allocation0]]
  $region62: #{_gcn_forward_jit.1} parent=0
    _
  %s15 = ssub.s32 1, %s13
  %s16 = scalar_select 0, %s15, %s13
  $region1: #{_gcn_forward_jit.1} parent=0
    #allocation2 [shape = 'u8[4096]{0}', space=vmem, size = 0x1000, scoped, tag = 'output window, operand 2, single buffered']
    #allocation3 [shape = 's32[1]{0}', space=sflag, size = 0x4, scoped, tag = 'scoped memory for _gcn_forward_jit.1']
    %17 = vsyncpa [#allocation3], 0
    // Predicated region
    $region2: #{_gcn_forward_jit.1} parent=1 // pred_check
      _
    $region3: #{_gcn_forward_jit.1} parent=1 // pred_check_branch
      %19 = sbr.rel (0) target = $region5
    $region4: #{_gcn_forward_jit.1} parent=1 // pred_region
      _
    $region5: #{_gcn_forward_jit.1} parent=1 // pred_fallthru
      _
    // Predicated region
    $region6: #{_gcn_forward_jit.1} parent=1 // pred_check
      _
    $region7: #{_gcn_forward_jit.1} parent=1 // pred_check_branch
      %21 = sbr.rel (0) target = $region9
    $region8: #{_gcn_forward_jit.1} parent=1 // pred_region
      _
    $region9: #{_gcn_forward_jit.1} parent=1 // pred_fallthru
      _
    // Predicated region
    $region10: #{_gcn_forward_jit.1} parent=1 // pred_check
      _
    $region11: #{_gcn_forward_jit.1} parent=1 // pred_check_branch
      %23 = sbr.rel (0) target = $region13
    $region12: #{_gcn_forward_jit.1} parent=1 // pred_region
      _
    $region13: #{_gcn_forward_jit.1} parent=1 // pred_fallthru
      _
    // Predicated region
    $region14: #{_gcn_forward_jit.1} parent=1 // pred_check
      _
    $region15: #{_gcn_forward_jit.1} parent=1 // pred_check_branch
      %25 = sbr.rel (0) target = $region17
    $region16: #{_gcn_forward_jit.1} parent=1 // pred_region
      _
    $region17: #{_gcn_forward_jit.1} parent=1 // pred_fallthru
      _
    // Predicated region
    $region18: #{_gcn_forward_jit.1} parent=1 // pred_check
      _
    $region19: #{_gcn_forward_jit.1} parent=1 // pred_check_branch
      %27 = sbr.rel (0) target = $region21
    $region20: #{_gcn_forward_jit.1} parent=1 // pred_region
      _
    $region21: #{_gcn_forward_jit.1} parent=1 // pred_fallthru
      _
    // Predicated region
    $region22: #{_gcn_forward_jit.1} parent=1 // pred_check
      _
    $region23: #{_gcn_forward_jit.1} parent=1 // pred_check_branch
      %29 = sbr.rel (0) target = $region25
    $region24: #{_gcn_forward_jit.1} parent=1 // pred_region
      _
    $region25: #{_gcn_forward_jit.1} parent=1 // pred_fallthru
      _
    // Predicated region
    $region26: #{_gcn_forward_jit.1} parent=1 // pred_check
      _
    $region27: #{_gcn_forward_jit.1} parent=1 // pred_check_branch
      %31 = sbr.rel (0) target = $region29
    $region28: #{_gcn_forward_jit.1} parent=1 // pred_region
      _
    $region29: #{_gcn_forward_jit.1} parent=1 // pred_fallthru
      _
    // Predicated region
    $region30: #{_gcn_forward_jit.1} parent=1 // pred_check
      _
    $region31: #{_gcn_forward_jit.1} parent=1 // pred_check_branch
      %33 = sbr.rel (0) target = $region33
    $region32: #{_gcn_forward_jit.1} parent=1 // pred_region
      _
    $region33: #{_gcn_forward_jit.1} parent=1 // pred_fallthru
      _
    // Predicated region
    $region34: #{_gcn_forward_jit.1} parent=1 // pred_check
      _
    $region35: #{_gcn_forward_jit.1} parent=1 // pred_check_branch
      %35 = sbr.rel (0) target = $region37
    $region36: #{_gcn_forward_jit.1} parent=1 // pred_region
      _
    $region37: #{_gcn_forward_jit.1} parent=1 // pred_fallthru
      _
    %v36 = vld [vmem:[%s0] sm:$0xff]
    %v37 = vld [vmem:[%s0 + $0x8] sm:$0xff]
    %v38 = vld [vmem:[%s1] sm:$0xff]
    %v39 = vld [vmem:[%s1 + $0x8] sm:$0xff]
    %v40 = vld [vmem:[%s2] sm:$0xff]
    %v41 = vld [vmem:[%s3] sm:$0x1]
    %vm42 = vcmask 130048
    %v44 = vsel %vm42, %v36, 0
    %v47 = vsel %vm42, %v37, 0
    %49 = vmatprep.subr.mxu0 0.0
    %50 = vmatpush1.msra.mxu0 %v38
    %51 = vmatprep.subr.mxu0 0.0
    %52 = vmatpush1.msra.mxu0 %v39
    %53 = vmatprep.subr.mxu0 0.0
    %54 = vmatpush1.msra.mxu0 0.0
    %55 = vmatprep.subr.mxu0 0.0
    %56 = vmatpush1.msra.mxu0 0.0
    %57 = vmatprep.subr.mxu0 0.0
    %58 = vmatpush1.msra.mxu0 0.0
    %59 = vmatprep.subr.mxu0 0.0
    %60 = vmatpush1.msra.mxu0 0.0
    %61 = vmatprep.subr.mxu0 0.0
    %62 = vmatpush1.msra.mxu0 0.0
    %63 = vmatprep.subr.mxu0 0.0
    %64 = vmatpush1.msra.mxu0 0.0
    %65 = vmatprep.subr.mxu0 0.0
    %66 = vmatpush1.msra.mxu0 0.0
    %67 = vmatprep.subr.mxu0 0.0
    %68 = vmatpush1.msra.mxu0 0.0
    %69 = vmatprep.subr.mxu0 0.0
    %70 = vmatpush1.msra.mxu0 0.0
    %71 = vmatprep.subr.mxu0 0.0
    %72 = vmatpush1.msra.mxu0 0.0
    %73 = vmatprep.subr.mxu0 0.0
    %74 = vmatpush1.msra.mxu0 0.0
    %75 = vmatprep.subr.mxu0 0.0
    %76 = vmatpush1.msra.mxu0 0.0
    %77 = vmatprep.subr.mxu0 0.0
    %78 = vmatpush1.msra.mxu0 0.0
    %79 = vmatprep.subr.mxu0 0.0
    %80 = vmatpush1.msra.mxu0 0.0
    %81 = vmatprep.subr.mxu0 0.0
    %82 = vmatpush1.msra.mxu0 0.0
    %83 = vmatprep.subr.mxu0 0.0
    %84 = vmatpush1.msra.mxu0 0.0
    %85 = vmatprep.subr.mxu0 0.0
    %86 = vmatpush1.msra.mxu0 0.0
    %87 = vmatprep.subr.mxu0 0.0
    %88 = vmatpush1.msra.mxu0 0.0
    %89 = vmatprep.subr.mxu0 0.0
    %90 = vmatpush1.msra.mxu0 0.0
    %91 = vmatprep.subr.mxu0 0.0
    %92 = vmatpush1.msra.mxu0 0.0
    %93 = vmatprep.subr.mxu0 0.0
    %94 = vmatpush1.msra.mxu0 0.0
    %95 = vmatprep.subr.mxu0 0.0
    %96 = vmatpush1.msra.mxu0 0.0
    %97 = vmatprep.subr.mxu0 0.0
    %98 = vmatpush1.msra.mxu0 0.0
    %99 = vmatprep.subr.mxu0 0.0
    %100 = vmatpush1.msra.mxu0 0.0
    %101 = vmatprep.subr.mxu0 0.0
    %102 = vmatpush1.msra.mxu0 0.0
    %103 = vmatprep.subr.mxu0 0.0
    %104 = vmatpush1.msra.mxu0 0.0
    %105 = vmatprep.subr.mxu0 0.0
    %106 = vmatpush1.msra.mxu0 0.0
    %107 = vmatprep.subr.mxu0 0.0
    %108 = vmatpush1.msra.mxu0 0.0
    %109 = vmatprep.subr.mxu0 0.0
    %110 = vmatpush1.msra.mxu0 0.0
    %111 = vmatprep.subr.mxu0 0.0
    %112 = vmatpush1.msra.mxu0 0.0
    %113 = vmatprep.mubr.f32.mxu0 0.0
    %114 = vmatmul.mubr.f32.gmra.mrb[0].mxu0 %v44
    %v115 = vpop.f32.mrb[0].mxu0
    %v116 = vadd.f32 0.0, %v115
    %v117 = vpop.f32.mrb[0].mxu0
    %118 = vmatprep.mubr.f32.mxu0 0.0
    %119 = vmatmul.mubr.f32.gmra.mrb[0].mxu0 %v47
    %v120 = vpop.f32.mrb[0].mxu0
    %v121 = vadd.f32 0.0, %v120
    %v122 = vpop.f32.mrb[0].mxu0
    %123 = vdwg.mxu0
    %v125 = vlaneseq
    %v126 = vshrl.u32 %v125, 7
    %v127 = vsub.s32 0, %v126
    %v128 = vrot.slane %v41, %v127
    %vm130 = vcmask 64512
    %v132 = vsel %vm130, %v116, 0
    %v135 = vsel %vm130, %v121, 0
    %137 = vmatprep.subr.mxu0 0.0
    %138 = vmatpush1.msra.mxu0 %v40
    %139 = vmatprep.subr.mxu0 0.0
    %140 = vmatpush1.msra.mxu0 0.0
    %141 = vmatprep.subr.mxu0 0.0
    %142 = vmatpush1.msra.mxu0 0.0
    %143 = vmatprep.subr.mxu0 0.0
    %144 = vmatpush1.msra.mxu0 0.0
    %145 = vmatprep.subr.mxu0 0.0
    %146 = vmatpush1.msra.mxu0 0.0
    %147 = vmatprep.subr.mxu0 0.0
    %148 = vmatpush1.msra.mxu0 0.0
    %149 = vmatprep.subr.mxu0 0.0
    %150 = vmatpush1.msra.mxu0 0.0
    %151 = vmatprep.subr.mxu0 0.0
    %152 = vmatpush1.msra.mxu0 0.0
    %153 = vmatprep.subr.mxu0 0.0
    %154 = vmatpush1.msra.mxu0 0.0
    %155 = vmatprep.subr.mxu0 0.0
    %156 = vmatpush1.msra.mxu0 0.0
    %157 = vmatprep.subr.mxu0 0.0
    %158 = vmatpush1.msra.mxu0 0.0
    %159 = vmatprep.subr.mxu0 0.0
    %160 = vmatpush1.msra.mxu0 0.0
    %161 = vmatprep.subr.mxu0 0.0
    %162 = vmatpush1.msra.mxu0 0.0
    %163 = vmatprep.subr.mxu0 0.0
    %164 = vmatpush1.msra.mxu0 0.0
    %165 = vmatprep.subr.mxu0 0.0
    %166 = vmatpush1.msra.mxu0 0.0
    %167 = vmatprep.subr.mxu0 0.0
    %168 = vmatpush1.msra.mxu0 0.0
    %169 = vmatprep.subr.mxu0 0.0
    %170 = vmatpush1.msra.mxu0 0.0
    %171 = vmatprep.subr.mxu0 0.0
    %172 = vmatpush1.msra.mxu0 0.0
    %173 = vmatprep.subr.mxu0 0.0
    %174 = vmatpush1.msra.mxu0 0.0
    %175 = vmatprep.subr.mxu0 0.0
    %176 = vmatpush1.msra.mxu0 0.0
    %177 = vmatprep.subr.mxu0 0.0
    %178 = vmatpush1.msra.mxu0 0.0
    %179 = vmatprep.subr.mxu0 0.0
    %180 = vmatpush1.msra.mxu0 0.0
    %181 = vmatprep.subr.mxu0 0.0
    %182 = vmatpush1.msra.mxu0 0.0
    %183 = vmatprep.subr.mxu0 0.0
    %184 = vmatpush1.msra.mxu0 0.0
    %185 = vmatprep.subr.mxu0 0.0
    %186 = vmatpush1.msra.mxu0 0.0
    %187 = vmatprep.subr.mxu0 0.0
    %188 = vmatpush1.msra.mxu0 0.0
    %189 = vmatprep.subr.mxu0 0.0
    %190 = vmatpush1.msra.mxu0 0.0
    %191 = vmatprep.subr.mxu0 0.0
    %192 = vmatpush1.msra.mxu0 0.0
    %193 = vmatprep.subr.mxu0 0.0
    %194 = vmatpush1.msra.mxu0 0.0
    %195 = vmatprep.subr.mxu0 0.0
    %196 = vmatpush1.msra.mxu0 0.0
    %197 = vmatprep.subr.mxu0 0.0
    %198 = vmatpush1.msra.mxu0 0.0
    %199 = vmatprep.subr.mxu0 0.0
    %200 = vmatpush1.msra.mxu0 0.0
    %201 = vmatprep.mubr.f32.mxu0 0.0
    %202 = vmatmul.mubr.f32.gmra.mrb[0].mxu0 %v132
    %v203 = vpop.f32.mrb[0].mxu0
    %v204 = vadd.f32 %v128, %v203
    %v205 = vpop.f32.mrb[0].mxu0
    %206 = vmatprep.mubr.f32.mxu0 0.0
    %207 = vmatmul.mubr.f32.gmra.mrb[0].mxu0 %v135
    %v208 = vpop.f32.mrb[0].mxu0
    %v209 = vadd.f32 %v128, %v208
    %v210 = vpop.f32.mrb[0].mxu0
    %211 = vdwg.mxu0
    %v212 = vmax.f32 %v204, 0.0
    %v213 = vmax.f32 %v209, 0.0
    %v214 = vld [vmem:[%s4] sm:$0xff]
    %v215 = vld [vmem:[%s4 + $0x8] sm:$0xff]
    %v216 = vld [vmem:[%s4 + $0x10] sm:$0xff]
    %v217 = vld [vmem:[%s4 + $0x18] sm:$0xff]
    %v218 = vld [vmem:[%s4 + $0x20] sm:$0xff]
    %v219 = vld [vmem:[%s4 + $0x28] sm:$0xff]
    %v220 = vld [vmem:[%s4 + $0x30] sm:$0xff]
    %v221 = vld [vmem:[%s4 + $0x38] sm:$0xff]
    %v222 = vld [vmem:[%s4 + $0x40] sm:$0xff]
    %v223 = vld [vmem:[%s4 + $0x48] sm:$0xff]
    %v224 = vld [vmem:[%s4 + $0x50] sm:$0xff]
    %v225 = vld [vmem:[%s4 + $0x58] sm:$0xff]
    %v226 = vld [vmem:[%s4 + $0x60] sm:$0xff]
    %v227 = vld [vmem:[%s4 + $0x68] sm:$0xff]
    %v228 = vld [vmem:[%s4 + $0x70] sm:$0xff]
    %v229 = vld [vmem:[%s4 + $0x78] sm:$0xff]
    %v230 = vld [vmem:[%s5] sm:$0x1]
    %231 = vmatprep.subr.mxu0 0.0
    %232 = vmatpush1.msra.mxu0 %v212
    %233 = vmatprep.subr.mxu0 0.0
    %234 = vmatpush1.msra.mxu0 %v213
    %235 = vmatprep.subr.mxu0 0.0
    %236 = vmatpush1.msra.mxu0 0.0
    %237 = vmatprep.subr.mxu0 0.0
    %238 = vmatpush1.msra.mxu0 0.0
    %239 = vmatprep.subr.mxu0 0.0
    %240 = vmatpush1.msra.mxu0 0.0
    %241 = vmatprep.subr.mxu0 0.0
    %242 = vmatpush1.msra.mxu0 0.0
    %243 = vmatprep.subr.mxu0 0.0
    %244 = vmatpush1.msra.mxu0 0.0
    %245 = vmatprep.subr.mxu0 0.0
    %246 = vmatpush1.msra.mxu0 0.0
    %247 = vmatprep.subr.mxu0 0.0
    %248 = vmatpush1.msra.mxu0 0.0
    %249 = vmatprep.subr.mxu0 0.0
    %250 = vmatpush1.msra.mxu0 0.0
    %251 = vmatprep.subr.mxu0 0.0
    %252 = vmatpush1.msra.mxu0 0.0
    %253 = vmatprep.subr.mxu0 0.0
    %254 = vmatpush1.msra.mxu0 0.0
    %255 = vmatprep.subr.mxu0 0.0
    %256 = vmatpush1.msra.mxu0 0.0
    %257 = vmatprep.subr.mxu0 0.0
    %258 = vmatpush1.msra.mxu0 0.0
    %259 = vmatprep.subr.mxu0 0.0
    %260 = vmatpush1.msra.mxu0 0.0
    %261 = vmatprep.subr.mxu0 0.0
    %262 = vmatpush1.msra.mxu0 0.0
    %263 = vmatprep.subr.mxu0 0.0
    %264 = vmatpush1.msra.mxu0 0.0
    %265 = vmatprep.subr.mxu0 0.0
    %266 = vmatpush1.msra.mxu0 0.0
    %267 = vmatprep.subr.mxu0 0.0
    %268 = vmatpush1.msra.mxu0 0.0
    %269 = vmatprep.subr.mxu0 0.0
    %270 = vmatpush1.msra.mxu0 0.0
    %271 = vmatprep.subr.mxu0 0.0
    %272 = vmatpush1.msra.mxu0 0.0
    %273 = vmatprep.subr.mxu0 0.0
    %274 = vmatpush1.msra.mxu0 0.0
    %275 = vmatprep.subr.mxu0 0.0
    %276 = vmatpush1.msra.mxu0 0.0
    %277 = vmatprep.subr.mxu0 0.0
    %278 = vmatpush1.msra.mxu0 0.0
    %279 = vmatprep.subr.mxu0 0.0
    %280 = vmatpush1.msra.mxu0 0.0
    %281 = vmatprep.subr.mxu0 0.0
    %282 = vmatpush1.msra.mxu0 0.0
    %283 = vmatprep.subr.mxu0 0.0
    %284 = vmatpush1.msra.mxu0 0.0
    %285 = vmatprep.subr.mxu0 0.0
    %286 = vmatpush1.msra.mxu0 0.0
    %287 = vmatprep.subr.mxu0 0.0
    %288 = vmatpush1.msra.mxu0 0.0
    %289 = vmatprep.subr.mxu0 0.0
    %290 = vmatpush1.msra.mxu0 0.0
    %291 = vmatprep.subr.mxu0 0.0
    %292 = vmatpush1.msra.mxu0 0.0
    %293 = vmatprep.subr.mxu0 0.0
    %294 = vmatpush1.msra.mxu0 0.0
    %295 = vmatprep.mubr.f32.mxu0 0.0
    %296 = vmatmul.mubr.f32.gmra.mrb[0].mxu0 %v44
    %v297 = vpop.f32.mrb[0].mxu0
    %v298 = vadd.f32 0.0, %v297
    %v299 = vpop.f32.mrb[0].mxu0
    %300 = vmatprep.mubr.f32.mxu0 0.0
    %301 = vmatmul.mubr.f32.gmra.mrb[0].mxu0 %v47
    %v302 = vpop.f32.mrb[0].mxu0
    %v303 = vadd.f32 0.0, %v302
    %v304 = vpop.f32.mrb[0].mxu0
    %305 = vdwg.mxu0
    %v307 = vlaneseq
    %v308 = vshrl.u32 %v307, 7
    %v309 = vsub.s32 0, %v308
    %v310 = vrot.slane %v230, %v309
    %312 = vmatprep.subr.mxu0 0.0
    %313 = vmatpush1.msra.mxu0 %v214
    %314 = vmatprep.subr.mxu0 0.0
    %315 = vmatpush1.msra.mxu0 %v215
    %316 = vmatprep.subr.mxu0 0.0
    %317 = vmatpush1.msra.mxu0 %v216
    %318 = vmatprep.subr.mxu0 0.0
    %319 = vmatpush1.msra.mxu0 %v217
    %320 = vmatprep.subr.mxu0 0.0
    %321 = vmatpush1.msra.mxu0 %v218
    %322 = vmatprep.subr.mxu0 0.0
    %323 = vmatpush1.msra.mxu0 %v219
    %324 = vmatprep.subr.mxu0 0.0
    %325 = vmatpush1.msra.mxu0 %v220
    %326 = vmatprep.subr.mxu0 0.0
    %327 = vmatpush1.msra.mxu0 %v221
    %328 = vmatprep.subr.mxu0 0.0
    %329 = vmatpush1.msra.mxu0 %v222
    %330 = vmatprep.subr.mxu0 0.0
    %331 = vmatpush1.msra.mxu0 %v223
    %332 = vmatprep.subr.mxu0 0.0
    %333 = vmatpush1.msra.mxu0 %v224
    %334 = vmatprep.subr.mxu0 0.0
    %335 = vmatpush1.msra.mxu0 %v225
    %336 = vmatprep.subr.mxu0 0.0
    %337 = vmatpush1.msra.mxu0 %v226
    %338 = vmatprep.subr.mxu0 0.0
    %339 = vmatpush1.msra.mxu0 %v227
    %340 = vmatprep.subr.mxu0 0.0
    %341 = vmatpush1.msra.mxu0 %v228
    %342 = vmatprep.subr.mxu0 0.0
    %343 = vmatpush1.msra.mxu0 %v229
    %344 = vmatprep.subr.mxu0 0.0
    %345 = vmatpush1.msra.mxu0 0.0
    %346 = vmatprep.subr.mxu0 0.0
    %347 = vmatpush1.msra.mxu0 0.0
    %348 = vmatprep.subr.mxu0 0.0
    %349 = vmatpush1.msra.mxu0 0.0
    %350 = vmatprep.subr.mxu0 0.0
    %351 = vmatpush1.msra.mxu0 0.0
    %352 = vmatprep.subr.mxu0 0.0
    %353 = vmatpush1.msra.mxu0 0.0
    %354 = vmatprep.subr.mxu0 0.0
    %355 = vmatpush1.msra.mxu0 0.0
    %356 = vmatprep.subr.mxu0 0.0
    %357 = vmatpush1.msra.mxu0 0.0
    %358 = vmatprep.subr.mxu0 0.0
    %359 = vmatpush1.msra.mxu0 0.0
    %360 = vmatprep.subr.mxu0 0.0
    %361 = vmatpush1.msra.mxu0 0.0
    %362 = vmatprep.subr.mxu0 0.0
    %363 = vmatpush1.msra.mxu0 0.0
    %364 = vmatprep.subr.mxu0 0.0
    %365 = vmatpush1.msra.mxu0 0.0
    %366 = vmatprep.subr.mxu0 0.0
    %367 = vmatpush1.msra.mxu0 0.0
    %368 = vmatprep.subr.mxu0 0.0
    %369 = vmatpush1.msra.mxu0 0.0
    %370 = vmatprep.subr.mxu0 0.0
    %371 = vmatpush1.msra.mxu0 0.0
    %372 = vmatprep.subr.mxu0 0.0
    %373 = vmatpush1.msra.mxu0 0.0
    %374 = vmatprep.subr.mxu0 0.0
    %375 = vmatpush1.msra.mxu0 0.0
    %376 = vmatprep.mubr.f32.mxu0 0.0
    %377 = vmatmul.mubr.f32.gmra.mrb[0].mxu0 %v298
    %v378 = vpop.f32.mrb[0].mxu0
    %v379 = vadd.f32 %v310, %v378
    %v380 = vpop.f32.mrb[0].mxu0
    %381 = vmatprep.mubr.f32.mxu0 0.0
    %382 = vmatmul.mubr.f32.gmra.mrb[0].mxu0 %v303
    %v383 = vpop.f32.mrb[0].mxu0
    %v384 = vadd.f32 %v310, %v383
    %v385 = vpop.f32.mrb[0].mxu0
    %386 = vdwg.mxu0
    %v387 = vmax.f32 %v379, 0.0
    %v388 = vmax.f32 %v384, 0.0
    %v389 = vld [vmem:[%s8] sm:$0xff]
    %v391 = vsel %vm42, %v389, 0
    %393 = vmatprep.subr.mxu0 0.0
    %394 = vmatpush1.msra.mxu0 %v387
    %395 = vmatprep.subr.mxu0 0.0
    %396 = vmatpush1.msra.mxu0 %v388
    %397 = vmatprep.subr.mxu0 0.0
    %398 = vmatpush1.msra.mxu0 0.0
    %399 = vmatprep.subr.mxu0 0.0
    %400 = vmatpush1.msra.mxu0 0.0
    %401 = vmatprep.subr.mxu0 0.0
    %402 = vmatpush1.msra.mxu0 0.0
    %403 = vmatprep.subr.mxu0 0.0
    %404 = vmatpush1.msra.mxu0 0.0
    %405 = vmatprep.subr.mxu0 0.0
    %406 = vmatpush1.msra.mxu0 0.0
    %407 = vmatprep.subr.mxu0 0.0
    %408 = vmatpush1.msra.mxu0 0.0
    %409 = vmatprep.subr.mxu0 0.0
    %410 = vmatpush1.msra.mxu0 0.0
    %411 = vmatprep.subr.mxu0 0.0
    %412 = vmatpush1.msra.mxu0 0.0
    %413 = vmatprep.subr.mxu0 0.0
    %414 = vmatpush1.msra.mxu0 0.0
    %415 = vmatprep.subr.mxu0 0.0
    %416 = vmatpush1.msra.mxu0 0.0
    %417 = vmatprep.subr.mxu0 0.0
    %418 = vmatpush1.msra.mxu0 0.0
    %419 = vmatprep.subr.mxu0 0.0
    %420 = vmatpush1.msra.mxu0 0.0
    %421 = vmatprep.subr.mxu0 0.0
    %422 = vmatpush1.msra.mxu0 0.0
    %423 = vmatprep.subr.mxu0 0.0
    %424 = vmatpush1.msra.mxu0 0.0
    %425 = vmatprep.subr.mxu0 0.0
    %426 = vmatpush1.msra.mxu0 0.0
    %427 = vmatprep.subr.mxu0 0.0
    %428 = vmatpush1.msra.mxu0 0.0
    %429 = vmatprep.subr.mxu0 0.0
    %430 = vmatpush1.msra.mxu0 0.0
    %431 = vmatprep.subr.mxu0 0.0
    %432 = vmatpush1.msra.mxu0 0.0
    %433 = vmatprep.subr.mxu0 0.0
    %434 = vmatpush1.msra.mxu0 0.0
    %435 = vmatprep.subr.mxu0 0.0
    %436 = vmatpush1.msra.mxu0 0.0
    %437 = vmatprep.subr.mxu0 0.0
    %438 = vmatpush1.msra.mxu0 0.0
    %439 = vmatprep.subr.mxu0 0.0
    %440 = vmatpush1.msra.mxu0 0.0
    %441 = vmatprep.subr.mxu0 0.0
    %442 = vmatpush1.msra.mxu0 0.0
    %443 = vmatprep.subr.mxu0 0.0
    %444 = vmatpush1.msra.mxu0 0.0
    %445 = vmatprep.subr.mxu0 0.0
    %446 = vmatpush1.msra.mxu0 0.0
    %447 = vmatprep.subr.mxu0 0.0
    %448 = vmatpush1.msra.mxu0 0.0
    %449 = vmatprep.subr.mxu0 0.0
    %450 = vmatpush1.msra.mxu0 0.0
    %451 = vmatprep.subr.mxu0 0.0
    %452 = vmatpush1.msra.mxu0 0.0
    %453 = vmatprep.subr.mxu0 0.0
    %454 = vmatpush1.msra.mxu0 0.0
    %455 = vmatprep.subr.mxu0 0.0
    %456 = vmatpush1.msra.mxu0 0.0
    %457 = vmatprep.mubr.f32.mxu0 0.0
    %458 = vmatmul.mubr.f32.gmra.mrb[0].mxu0 %v391
    %v459 = vpop.f32.mrb[0].mxu0
    %v460 = vadd.f32 0.0, %v459
    %v461 = vpop.f32.mrb[0].mxu0
    %462 = vdwg.mxu0
    %463 = vst [vmem:[#allocation2] sm:$0xff] %v460
    %v464 = vld [vmem:[%s6] sm:$0xff]
    %v465 = vld [vmem:[%s6 + $0x8] sm:$0xff]
    %v466 = vld [vmem:[%s6 + $0x10] sm:$0xff]
    %v467 = vld [vmem:[%s6 + $0x18] sm:$0xff]
    %v468 = vld [vmem:[%s6 + $0x20] sm:$0xff]
    %v469 = vld [vmem:[%s6 + $0x28] sm:$0xff]
    %v470 = vld [vmem:[%s6 + $0x30] sm:$0xff]
    %v471 = vld [vmem:[%s6 + $0x38] sm:$0xff]
    %v472 = vld [vmem:[%s6 + $0x40] sm:$0xff]
    %v473 = vld [vmem:[%s6 + $0x48] sm:$0xff]
    %v474 = vld [vmem:[%s6 + $0x50] sm:$0xff]
    %v475 = vld [vmem:[%s6 + $0x58] sm:$0xff]
    %v476 = vld [vmem:[%s6 + $0x60] sm:$0xff]
    %v477 = vld [vmem:[%s6 + $0x68] sm:$0xff]
    %v478 = vld [vmem:[%s6 + $0x70] sm:$0xff]
    %v479 = vld [vmem:[%s6 + $0x78] sm:$0xff]
    %v480 = vld [vmem:[%s7] sm:$0x1]
    %v482 = vlaneseq
    %v483 = vshrl.u32 %v482, 7
    %v484 = vsub.s32 0, %v483
    %v485 = vrot.slane %v480, %v484
    %487 = vmatprep.subr.mxu0 0.0
    %488 = vmatpush1.msra.mxu0 %v464
    %489 = vmatprep.subr.mxu0 0.0
    %490 = vmatpush1.msra.mxu0 %v465
    %491 = vmatprep.subr.mxu0 0.0
    %492 = vmatpush1.msra.mxu0 %v466
    %493 = vmatprep.subr.mxu0 0.0
    %494 = vmatpush1.msra.mxu0 %v467
    %495 = vmatprep.subr.mxu0 0.0
    %496 = vmatpush1.msra.mxu0 %v468
    %497 = vmatprep.subr.mxu0 0.0
    %498 = vmatpush1.msra.mxu0 %v469
    %499 = vmatprep.subr.mxu0 0.0
    %500 = vmatpush1.msra.mxu0 %v470
    %501 = vmatprep.subr.mxu0 0.0
    %502 = vmatpush1.msra.mxu0 %v471
    %503 = vmatprep.subr.mxu0 0.0
    %504 = vmatpush1.msra.mxu0 %v472
    %505 = vmatprep.subr.mxu0 0.0
    %506 = vmatpush1.msra.mxu0 %v473
    %507 = vmatprep.subr.mxu0 0.0
    %508 = vmatpush1.msra.mxu0 %v474
    %509 = vmatprep.subr.mxu0 0.0
    %510 = vmatpush1.msra.mxu0 %v475
    %511 = vmatprep.subr.mxu0 0.0
    %512 = vmatpush1.msra.mxu0 %v476
    %513 = vmatprep.subr.mxu0 0.0
    %514 = vmatpush1.msra.mxu0 %v477
    %515 = vmatprep.subr.mxu0 0.0
    %516 = vmatpush1.msra.mxu0 %v478
    %517 = vmatprep.subr.mxu0 0.0
    %518 = vmatpush1.msra.mxu0 %v479
    %519 = vmatprep.subr.mxu0 0.0
    %520 = vmatpush1.msra.mxu0 0.0
    %521 = vmatprep.subr.mxu0 0.0
    %522 = vmatpush1.msra.mxu0 0.0
    %523 = vmatprep.subr.mxu0 0.0
    %524 = vmatpush1.msra.mxu0 0.0
    %525 = vmatprep.subr.mxu0 0.0
    %526 = vmatpush1.msra.mxu0 0.0
    %527 = vmatprep.subr.mxu0 0.0
    %528 = vmatpush1.msra.mxu0 0.0
    %529 = vmatprep.subr.mxu0 0.0
    %530 = vmatpush1.msra.mxu0 0.0
    %531 = vmatprep.subr.mxu0 0.0
    %532 = vmatpush1.msra.mxu0 0.0
    %533 = vmatprep.subr.mxu0 0.0
    %534 = vmatpush1.msra.mxu0 0.0
    %535 = vmatprep.subr.mxu0 0.0
    %536 = vmatpush1.msra.mxu0 0.0
    %537 = vmatprep.subr.mxu0 0.0
    %538 = vmatpush1.msra.mxu0 0.0
    %539 = vmatprep.subr.mxu0 0.0
    %540 = vmatpush1.msra.mxu0 0.0
    %541 = vmatprep.subr.mxu0 0.0
    %542 = vmatpush1.msra.mxu0 0.0
    %543 = vmatprep.subr.mxu0 0.0
    %544 = vmatpush1.msra.mxu0 0.0
    %545 = vmatprep.subr.mxu0 0.0
    %546 = vmatpush1.msra.mxu0 0.0
    %547 = vmatprep.subr.mxu0 0.0
    %548 = vmatpush1.msra.mxu0 0.0
    %549 = vmatprep.subr.mxu0 0.0
    %550 = vmatpush1.msra.mxu0 0.0
    %551 = vmatprep.mubr.f32.mxu0 0.0
    %552 = vmatmul.mubr.f32.gmra.mrb[0].mxu0 %v460
    %v553 = vpop.f32.mrb[0].mxu0
    %v554 = vadd.f32 %v485, %v553
    %v555 = vpop.f32.mrb[0].mxu0
    %556 = vdwg.mxu0
    %v557 = vmax.f32 %v554, 0.0
    %558 = vst [vmem:[%s10] sm:$0xff] %v557
    %v559 = vlaneseq
    %v560 = vand.u32 %v559, 127
    %vm561 = vcmp.lt.s32.totalorder %v560, 4
    %v562 = vsel %vm561, %v557, -1e+30
    %563 = vmax.xlane.f32.xlu0 %v562
    %v564 = vpop.xlane.xlu0 %563
    %v565 = vsub.f32 %v562, %v564
    %v566 = vmul.f32 %v565, 1.442695
    %v567 = vpow.pop %v566
    %568 = vadd.xlane.f32.xlu0 %v567
    %v569 = vpop.xlane.xlu0 %568
    %v570 = vlog2.pop %v569
    %v571 = vmul.f32 %v570, 0.6931472
    %v572 = vsub.f32 %v565, %v571
    %573 = vst [vmem:[%s9] sm:$0xff] %v572
    // Predicated region
    $region38: #{_gcn_forward_jit.1} parent=1 // pred_check
      _
    $region39: #{_gcn_forward_jit.1} parent=1 // pred_check_branch
      %575 = sbr.rel (0) target = $region41
    $region40: #{_gcn_forward_jit.1} parent=1 // pred_region
      _
    $region41: #{_gcn_forward_jit.1} parent=1 // pred_fallthru
      _
    // Predicated region
    $region42: #{_gcn_forward_jit.1} parent=1 // pred_check
      _
    $region43: #{_gcn_forward_jit.1} parent=1 // pred_check_branch
      %577 = sbr.rel (0) target = $region45
    $region44: #{_gcn_forward_jit.1} parent=1 // pred_region
      _
    $region45: #{_gcn_forward_jit.1} parent=1 // pred_fallthru
      _
    // Predicated region
    $region46: #{_gcn_forward_jit.1} parent=1 // pred_check
      _
    $region47: #{_gcn_forward_jit.1} parent=1 // pred_check_branch
      %579 = sbr.rel (0) target = $region49
    $region48: #{_gcn_forward_jit.1} parent=1 // pred_region
      %s581 = ssub.s32 128, 128
      %582 = vsyncadd [#allocation3], %s581
      %s584 = sshll.u32 [#allocation2], 4
      %s585 = int_to_ptr.vmem [resolvable:$true] %s584
      %587 = dma.vmem_to_hbm [thread:$0]  %s585, 128, %s11, [#allocation3]
    $region49: #{_gcn_forward_jit.1} parent=1 // pred_fallthru
      _
    // Predicated region
    $region50: #{_gcn_forward_jit.1} parent=1 // pred_check
      _
    $region51: #{_gcn_forward_jit.1} parent=1 // pred_check_branch
      %589 = sbr.rel (0) target = $region53
    $region52: #{_gcn_forward_jit.1} parent=1 // pred_region
      _
    $region53: #{_gcn_forward_jit.1} parent=1 // pred_fallthru
      _
    // Predicated region
    $region54: #{_gcn_forward_jit.1} parent=1 // pred_check
      _
    $region55: #{_gcn_forward_jit.1} parent=1 // pred_check_branch
      %591 = sbr.rel (0) target = $region57
    $region56: #{_gcn_forward_jit.1} parent=1 // pred_region
      _
    $region57: #{_gcn_forward_jit.1} parent=1 // pred_fallthru
      _
    // Predicated region
    $region58: #{_gcn_forward_jit.1} parent=1 // pred_check
      _
    $region59: #{_gcn_forward_jit.1} parent=1 // pred_check_branch
      %593 = sbr.rel (0) target = $region61
    $region60: #{_gcn_forward_jit.1} parent=1 // pred_region
      %594 = dma.done [#allocation3], 128
    $region61: #{_gcn_forward_jit.1} parent=1 // pred_fallthru
      _
    %595 = vsyncpa [#allocation3], 1

</llo_original>
